<compile_context>
chip_gen: v6e
topology: v6e:2x2x1
jax: 0.10.0
libtpu: 0.0.40
codegen_flags: <defaults>
</compile_context>

<pallas_src>
import functools

import jax
import jax.numpy as jnp
import numpy as np
from jax.experimental import pallas as pl
from jax.experimental.pallas import tpu as pltpu


# ---------------------------------------------------------------------------
# Kernel 1: v_head matvec on the MXU.  rewards[b, s] = hidden[b, s, :] @ w
# hidden is streamed with full-D, large-S contiguous tiles (HBM-bound).
# ---------------------------------------------------------------------------
def _vhead_matvec_kernel(h_ref, w_ref, r_ref):
    # h_ref: (block_s, D) in the streaming dtype (bf16/f32)
    # w_ref: (D, 1) same dtype (constant block, loaded once)
    # r_ref: (block_s, 1) float32
    r_ref[...] = jnp.dot(h_ref[...], w_ref[...],
                         preferred_element_type=jnp.float32)


# ---------------------------------------------------------------------------
# Kernel 2: pairwise logsigmoid loss + end scores (tiny, off the roofline).
# ---------------------------------------------------------------------------
def _pairwise_loss_kernel(cids_ref, rids_ref, cr_ref, rr_ref,
                          ploss_ref, cms_ref, rms_ref,
                          *, pad_id, num_pad_begin, seq_len):
    chosen_ids = cids_ref[...]                            # (R, S) int32
    rejected_ids = rids_ref[...]
    cr = cr_ref[...]                                      # (R, S) f32
    rr = rr_ref[...]

    chosen_pad = chosen_ids == pad_id
    rejected_pad = rejected_ids == pad_id
    united_unpad = jnp.logical_not(jnp.logical_and(chosen_pad, rejected_pad))
    div = chosen_ids != rejected_ids

    col = jax.lax.broadcasted_iota(jnp.int32, chosen_ids.shape, 1)  # (R, S)
    # cumulative-OR of `div` == positions at/after the first divergence
    first_div = jnp.min(jnp.where(div, col, seq_len), axis=1, keepdims=True)
    div_cum = col >= first_div                            # (R, S)
    fallback = col == (seq_len - 1)
    has_div = first_div < seq_len                         # (R, 1)

    loss_mask = jnp.where(has_div,
                          jnp.logical_and(div_cum, united_unpad),
                          fallback)
    lm = loss_mask.astype(jnp.float32)

    # numerically-stable logsigmoid (log1p form)
    x = cr - rr
    logsig = (jnp.minimum(x, 0.0) - jnp.log1p(jnp.exp(-jnp.abs(x)))) * lm
    num_el = jnp.sum(lm, axis=1, keepdims=True)           # >= 1 always
    ploss_ref[...] = -(jnp.sum(logsig, axis=1, keepdims=True) / num_el)

    def end_score(pad_mask, reward):
        # torch.roll(p, -n, 0) then torch.roll(., n-1, 0) == roll(p, -1)
        pad_f = pad_mask.astype(jnp.float32)
        shifted = jnp.concatenate([pad_f[:, 1:], pad_f[:, :1]], axis=1)
        ind = jnp.logical_and(jnp.logical_not(pad_mask), shifted > 0.5)
        enough_pad = (jnp.sum(pad_mask.astype(jnp.int32), axis=1, keepdims=True)
                      > num_pad_begin)
        ind = jnp.where(enough_pad, ind, fallback)
        return jnp.sum(ind.astype(jnp.float32) * reward, axis=1, keepdims=True)

    cms_ref[...] = end_score(chosen_pad, cr)
    rms_ref[...] = end_score(rejected_pad, rr)


# ---------------------------------------------------------------------------
# Sizing helpers (generation-aware).
# ---------------------------------------------------------------------------
def _vmem_capacity_bytes():
    try:
        return int(pltpu.get_tpu_info().vmem_capacity_bytes)
    except Exception:
        return 128 << 20


def _pick_block_s(S, D, itemsize, target_bytes):
    """Largest multiple-of-8 divisor of S whose (block_s, D) hidden tile fits
    under target_bytes (whole row if it already fits)."""
    if S * D * itemsize <= target_bytes:
        return S
    cands = [c for c in range(8, S + 1, 8) if S % c == 0]
    fits = [c for c in cands if c * D * itemsize <= target_bytes]
    if fits:
        return max(fits)
    return min(cands) if cands else S


def _pick_block_rows(bs, S, target_bytes=2 << 20):
    """Row-block for the tiny loss kernel: multiple of 8 (layout rule) or 1."""
    for c in (256, 128, 64, 32, 16, 8):
        if bs % c == 0 and c * S * 4 <= target_bytes:
            return c
    return 1


# ---------------------------------------------------------------------------
# Public forward.
# ---------------------------------------------------------------------------
def reward_model_forward(input_ids, hidden_states, v_head_w, pad_id=0,
                         num_padding_at_beginning=0, block_s=None):
    """input_ids: (2*bs, S) int (chosen first half, rejected second half);
       hidden_states: (2*bs, S, D) f32/bf16 (base-transformer output);
       v_head_w: (1, D) (nn.Linear(D, 1, bias=False).weight)."""
    two_bs, seq_len = input_ids.shape
    assert two_bs % 2 == 0, "input_ids must stack chosen then rejected rows"
    bs = two_bs // 2
    D = hidden_states.shape[-1]
    h_dtype = hidden_states.dtype
    itemsize = jnp.dtype(h_dtype).itemsize

    input_ids = input_ids.astype(jnp.int32)
    # v_head weight as a (D, 1) column in the streaming dtype (MXU RHS).
    w_col = jnp.reshape(v_head_w, (-1, 1)).astype(h_dtype)

    # --- generation-aware tile / VMEM sizing -------------------------------
    cap = _vmem_capacity_bytes()
    tile_target = (16 << 20) if cap >= (100 << 20) else (10 << 20)
    if block_s is None:
        block_s = _pick_block_s(seq_len, D, itemsize, tile_target)
    assert seq_len % block_s == 0 and (block_s % 8 == 0 or block_s == seq_len)
    n_s = seq_len // block_s

    hidden_tile_bytes = block_s * D * itemsize
    vmem_limit = (2 * hidden_tile_bytes          # double-buffered hidden tile
                  + 2 * block_s * 128 * 4        # (block_s, 1) f32 out (lane-padded)
                  + 2 * D * max(itemsize, 4)     # w column
                  + (8 << 20))                   # slack
    vmem_limit = int(max(32 << 20, min(vmem_limit, cap - (8 << 20))))

    cost1 = pl.CostEstimate(
        flops=2 * two_bs * seq_len * D,
        transcendentals=0,
        bytes_accessed=(two_bs * seq_len * D * itemsize
                        + D * itemsize
                        + two_bs * seq_len * 4))

    # --- kernel 1: rewards = hidden @ w (MXU, f32 accumulation) ------------
    rewards = pl.pallas_call(
        _vhead_matvec_kernel,
        out_shape=jax.ShapeDtypeStruct((two_bs, seq_len, 1), jnp.float32),
        grid=(two_bs, n_s),
        in_specs=[
            pl.BlockSpec((None, block_s, D), lambda b, s: (b, s, 0)),
            pl.BlockSpec((D, 1), lambda b, s: (0, 0)),
        ],
        out_specs=pl.BlockSpec((None, block_s, 1), lambda b, s: (b, s, 0)),
        compiler_params=pltpu.CompilerParams(
            dimension_semantics=("parallel", "parallel"),
            vmem_limit_bytes=vmem_limit),
        cost_estimate=cost1,
    )(hidden_states, w_col)
    rewards = rewards[..., 0]                    # (2*bs, S) f32, tiny

    # --- kernel 2: pairwise loss + end scores ------------------------------
    block_rows = _pick_block_rows(bs, seq_len)
    n_half = bs // block_rows                    # block offset of rejected half

    kernel2 = functools.partial(_pairwise_loss_kernel, pad_id=pad_id,
                                num_pad_begin=num_padding_at_beginning,
                                seq_len=seq_len)
    cost2 = pl.CostEstimate(
        flops=32 * bs * seq_len,
        transcendentals=2 * bs * seq_len,
        bytes_accessed=2 * two_bs * seq_len * 4 + 3 * bs * 4)

    ploss, cms, rms = pl.pallas_call(
        kernel2,
        out_shape=(
            jax.ShapeDtypeStruct((bs, 1), jnp.float32),
            jax.ShapeDtypeStruct((bs, 1), jnp.float32),
            jax.ShapeDtypeStruct((bs, 1), jnp.float32),
        ),
        grid=(bs // block_rows,),
        in_specs=[
            pl.BlockSpec((block_rows, seq_len), lambda i: (i, 0)),          # chosen ids
            pl.BlockSpec((block_rows, seq_len), lambda i: (i + n_half, 0)), # rejected ids
            pl.BlockSpec((block_rows, seq_len), lambda i: (i, 0)),          # chosen rewards
            pl.BlockSpec((block_rows, seq_len), lambda i: (i + n_half, 0)), # rejected rewards
        ],
        out_specs=(
            pl.BlockSpec((block_rows, 1), lambda i: (i, 0)),
            pl.BlockSpec((block_rows, 1), lambda i: (i, 0)),
            pl.BlockSpec((block_rows, 1), lambda i: (i, 0)),
        ),
        compiler_params=pltpu.CompilerParams(
            dimension_semantics=("parallel",)),
        cost_estimate=cost2,
    )(input_ids, input_ids, rewards, rewards)

    loss = jnp.sum(ploss) / bs
    return {
        "loss": loss,
        "chosen_mean_scores": cms[:, 0],
        "rejected_mean_scores": rms[:, 0],
    }


# ---------------------------------------------------------------------------
# Pure-JAX reference (mirror of the torch optimized_loss_calc=True branch).
# ---------------------------------------------------------------------------
def _reference(input_ids, hidden, w, pad_id, num_pad_begin):
    bs = input_ids.shape[0] // 2
    S = input_ids.shape[1]
    rewards = jnp.einsum("bsd,d->bs", hidden.astype(jnp.float32),
                         w[0].astype(jnp.float32))
    chosen_ids, rejected_ids = input_ids[:bs], input_ids[bs:]
    cr, rr = rewards[:bs], rewards[bs:]
    chosen_pad = chosen_ids == pad_id
    rejected_pad = rejected_ids == pad_id
    united_unpad = ~(chosen_pad & rejected_pad)
    div = chosen_ids != rejected_ids
    div_cum = jnp.cumsum(div.astype(jnp.int32), axis=1) > 0
    fallback = jnp.arange(S)[None, :] == S - 1
    loss_mask = div_cum & united_unpad
    has_div = div.sum(axis=1, keepdims=True) > 0
    loss_mask = jnp.where(has_div, loss_mask, fallback)
    logsig = jax.nn.log_sigmoid(cr - rr) * loss_mask
    num = loss_mask.sum(axis=1).astype(jnp.float32)
    loss = jnp.mean(-(logsig.sum(axis=1) / num))

    def end_score(pad, r):
        shifted = jnp.roll(pad, -1, axis=1)
        m = (~pad) & shifted
        m = jnp.where(pad.sum(axis=1, keepdims=True) > num_pad_begin, m, fallback)
        return (m * r).sum(axis=1)

    return loss, end_score(chosen_pad, cr), end_score(rejected_pad, rr)


if __name__ == "__main__":
    bs, seq_len, n_embd = 2, 256, 256
    pad_id = 0
    num_padding_at_beginning = 0

    key = jax.random.PRNGKey(0)
    k_h, k_w = jax.random.split(key)

    # deterministic synthetic token ids (chosen first half, rejected second half)
    pos = jnp.arange(seq_len, dtype=jnp.int32)[None, :]
    tok = (pos % 37) + 1                                   # content tokens != pad_id
    chosen = jnp.tile(tok, (bs, 1))
    rejected = chosen.at[:, seq_len // 2:].add(1)          # diverge from midpoint
    c_len = jnp.array([[seq_len - 4], [seq_len - 12]], dtype=jnp.int32)
    r_len = jnp.array([[seq_len - 8], [seq_len - 2]], dtype=jnp.int32)
    chosen = jnp.where(pos < c_len, chosen, pad_id)        # right padding
    rejected = jnp.where(pos < r_len, rejected, pad_id)
    input_ids = jnp.concatenate([chosen, rejected], axis=0)   # (4, 256)

    # stand-in transformer output (streamed as bf16) + deterministic v_head weight
    hidden_states = jax.random.normal(
        k_h, (2 * bs, seq_len, n_embd), dtype=jnp.float32).astype(jnp.bfloat16)
    bound = 1.0 / np.sqrt(n_embd)
    v_head_w = jax.random.uniform(
        k_w, (1, n_embd), minval=-bound, maxval=bound,
        dtype=jnp.float32).astype(jnp.bfloat16)

    # block_s=128 forces 2 seq tiles so the multi-tile streaming path is exercised
    out = reward_model_forward(input_ids, hidden_states, v_head_w,
                               pad_id=pad_id,
                               num_padding_at_beginning=num_padding_at_beginning,
                               block_s=128)
    jax.block_until_ready(out["loss"])

    ref_loss, ref_cms, ref_rms = _reference(input_ids, hidden_states, v_head_w,
                                            pad_id, num_padding_at_beginning)
    assert np.allclose(np.asarray(out["loss"]), np.asarray(ref_loss),
                       rtol=1e-3, atol=1e-4)
    assert np.allclose(np.asarray(out["chosen_mean_scores"]), np.asarray(ref_cms),
                       rtol=1e-3, atol=1e-4)
    assert np.allclose(np.asarray(out["rejected_mean_scores"]), np.asarray(ref_rms),
                       rtol=1e-3, atol=1e-4)

    print("KERNEL_OK")
</pallas_src>

<mosaic_0001>
module attributes {stable_mosaic.version = 11 : i64} {
  func.func @_vhead_matvec_kernel(%arg0: i32, %arg1: i32, %arg2: memref<1x128x256xbf16, #tpu.memory_space<vmem>>, %arg3: memref<256x1xbf16, #tpu.memory_space<vmem>>, %arg4: memref<1x128x1xf32, #tpu.memory_space<vmem>>) attributes {dimension_semantics = [#tpu.dimension_semantics<parallel>, #tpu.dimension_semantics<parallel>], iteration_bounds = array<i64: 4, 2>, scalar_prefetch = 0 : i64, scratch_operands = 0 : i64, tpu.core_type = #tpu.core_type<tc>, window_params = [{transform_indices = @transform_0, window_bounds = array<i64: 1, 128, 256>}, {pipeline_mode = #tpu.pipeline_mode<synchronous>, transform_indices = @transform_1, window_bounds = array<i64: 256, 1>}, {transform_indices = @transform_2, window_bounds = array<i64: 1, 128, 1>}]} {
    %c0 = arith.constant 0 : index
    %c0_0 = arith.constant 0 : index
    %c0_1 = arith.constant 0 : index
    %0 = vector.load %arg2[%c0, %c0_0, %c0_1] : memref<1x128x256xbf16, #tpu.memory_space<vmem>>, vector<1x128x256xbf16>
    %1 = vector.shape_cast %0 : vector<1x128x256xbf16> to vector<128x256xbf16>
    %c0_2 = arith.constant 0 : index
    %c0_3 = arith.constant 0 : index
    %2 = vector.load %arg3[%c0_2, %c0_3] : memref<256x1xbf16, #tpu.memory_space<vmem>>, vector<256x1xbf16>
    %cst = arith.constant dense<0.000000e+00> : vector<128x1xf32>
    %3 = tpu.matmul %1, %2, %cst {dimension_numbers = #tpu.dot_dimension_numbers<[1], [0], [0], [1], [0, 0, 1, 1], [], []>} : vector<128x256xbf16>, vector<256x1xbf16>, vector<128x1xf32> -> vector<128x1xf32>
    %c0_4 = arith.constant 0 : index
    %c0_5 = arith.constant 0 : index
    %c0_6 = arith.constant 0 : index
    %4 = vector.load %arg4[%c0_4, %c0_5, %c0_6] : memref<1x128x1xf32, #tpu.memory_space<vmem>>, vector<1x128x1xf32>
    %5 = vector.shape_cast %4 : vector<1x128x1xf32> to vector<128x1xf32>
    %6 = vector.shape_cast %3 : vector<128x1xf32> to vector<1x128x1xf32>
    tpu.vector_store %arg4[%c0_4, %c0_5, %c0_6], %6 {strides = array<i32>} : memref<1x128x1xf32, #tpu.memory_space<vmem>>, vector<1x128x1xf32>,
    return
  }
  func.func @transform_0(%arg0: i32, %arg1: i32) -> (i32, i32, i32) {
    %c0_i32 = arith.constant 0 : i32
    %c0_i32_0 = arith.constant 0 : i32
    return %arg0, %arg1, %c0_i32 : i32, i32, i32
  }
  func.func @transform_1(%arg0: i32, %arg1: i32) -> (i32, i32) {
    %c0_i32 = arith.constant 0 : i32
    %c0_i32_0 = arith.constant 0 : i32
    %c0_i32_1 = arith.constant 0 : i32
    return %c0_i32, %c0_i32_0 : i32, i32
  }
  func.func @transform_2(%arg0: i32, %arg1: i32) -> (i32, i32, i32) {
    %c0_i32 = arith.constant 0 : i32
    %c0_i32_0 = arith.constant 0 : i32
    return %arg0, %arg1, %c0_i32 : i32, i32, i32
  }
}

</mosaic_0001>

<llo_original>
// kernel: tpu_custom_call.1
$region0: #{tpu_custom_call.1}
  #allocation0 [shape = 'u32[]', space=smem, size = 0x4, offset = 0x4, fixed_abs, tag = 'smem constant byte address 0x4 - core index']
  #allocation1 [shape = 'u32[144,128]{1,0:T(1,128)}', space=vmem, size = 0x12000, scoped, tag = 'internal scratch']
  %s0 = inlined_call_operand.hbm [shape: bf16[4,256,256], index: 0, kind: input, shape index: {}]
  %s1 = inlined_call_operand.vmem [shape: bf16[256,1], index: 1, kind: input, shape index: {}]
  %s2 = inlined_call_operand.vmem [shape: f32[4,256,1], index: 2, kind: output, shape index: {}]
  %s3 = sld [smem:[#allocation0]]
  $region45: #{tpu_custom_call.1} parent=0
    _
  %s5 = ssub.s32 1, %s3
  %s6 = scalar_select 0, %s5, %s3
  $region1: #{tpu_custom_call.1} parent=0
    #allocation2 [shape = 'u8[131072]{0}', space=vmem, size = 0x20000, scoped, tag = 'input window, operand 0']
    #allocation3 [shape = 's32[2]{0}', space=sflag, size = 0x8, scoped, tag = 'scoped memory for tpu_custom_call.1']
    %7 = vsyncpa [#allocation3], 0
    %s8 = scalar_lea.sflag [#allocation3], 1
    %9 = vsyncpa %s8, 0
    loop: start=0, step=1, limit=10
    $region2: #{tpu_custom_call.1} parent=1 // loop_pre_header
      _
    $region3: #{tpu_custom_call.1} parent=1 // loop_header
      %s11 = sphi 0, %s15
      %p12 = scmp.ge.s32.totalorder %s11, 10
      %s18 = sphi 0, %s30
      %s19 = sphi 0, %s26
      %s20 = sphi 0, %s18
      %s21 = sphi 0, %s19
      %s22 = sphi 0, %s20
      %s23 = sphi 0, %s21
      %s35 = sphi 0, %s37
      %s38 = sphi 0, %s35
      %s39 = sphi 0, %s38
      %s55 = sphi 0, %s39
      %s59 = sphi 0, %s59
      %s61 = sphi 0, %s59
      %s62 = sphi 0, %s61
      %s76 = sphi 0, %s62
      %s84 = sphi 0, %s86
      %s87 = sphi 0, %s84
      %s88 = sphi 0, %s87
      %s104 = sphi 0, %s88
    $region4: #{tpu_custom_call.1} parent=1 // loop_header_branch
      %14 = sbr.rel (%p12) target = $region8
    $region5: #{tpu_custom_call.1} parent=1 // loop_body
      %s16 = ssub.s32 %s11, 1
      %s17 = ssub.s32 %s11, 2
      %s24 = sadd.s32 1, %s19
      %p25 = scmp.ge.s32.totalorder %s24, 2
      %s26 = scalar_select %p25, 0, %s24
      %s27 = sadd.s32 1, %s18
      %s28 = scalar_select %p25, %s27, %s18
      %p29 = scmp.ge.s32.totalorder %s28, 4
      %s30 = scalar_select %p29, 0, %s28
      %s31 = ssub.s32 %s18, %s30
      %s32 = ssub.s32 %s19, %s26
      %s33 = sor.u32 %s31, %s32
      %p34 = scmp.eq.s32.totalorder %s33, 0
      %s36 = sadd.s32 %s35, 1
      %s37 = scalar_select %p34, %s35, %s36
      %p40 = pneg %p34
      %p41 = scmp.eq.s32.totalorder %s11, 7
      %p42 = por %p40, %p41
      %p43 = scmp.ne.s32.totalorder %s35, %s38
      %p44 = scmp.eq.s32.totalorder %s11, 0
      %p45 = por %p43, %p44
      %p46 = scmp.ne.s32.totalorder %s35, %s38
      %p47 = scmp.eq.s32.totalorder %s16, 7
      %p48 = por %p46, %p47
      %p49 = scmp.ne.s32.totalorder %s38, %s39
      %p50 = scmp.eq.s32.totalorder %s16, 0
      %p51 = por %p49, %p50
      %p52 = scmp.ne.s32.totalorder %s38, %s39
      %p53 = scmp.eq.s32.totalorder %s17, 7
      %p54 = por %p52, %p53
      %p56 = scmp.ne.s32.totalorder %s39, %s55
      %p57 = scmp.eq.s32.totalorder %s17, 0
      %p58 = por %p56, %p57
      %s60 = sadd.s32 %s59, 1
      %p63 = scmp.eq.s32.totalorder %s11, 7
      %p64 = scmp.ne.s32.totalorder %s59, %s61
      %p65 = scmp.eq.s32.totalorder %s11, 0
      %p66 = por %p64, %p65
      %p67 = scmp.ne.s32.totalorder %s59, %s61
      %p68 = scmp.eq.s32.totalorder %s16, 7
      %p69 = por %p67, %p68
      %p70 = scmp.ne.s32.totalorder %s61, %s62
      %p71 = scmp.eq.s32.totalorder %s16, 0
      %p72 = por %p70, %p71
      %p73 = scmp.ne.s32.totalorder %s61, %s62
      %p74 = scmp.eq.s32.totalorder %s17, 7
      %p75 = por %p73, %p74
      %p77 = scmp.ne.s32.totalorder %s62, %s76
      %p78 = scmp.eq.s32.totalorder %s17, 0
      %p79 = por %p77, %p78
      %s80 = ssub.s32 %s18, %s30
      %s81 = ssub.s32 %s19, %s26
      %s82 = sor.u32 %s80, %s81
      %p83 = scmp.eq.s32.totalorder %s82, 0
      %s85 = sadd.s32 %s84, 1
      %s86 = scalar_select %p83, %s84, %s85
      %p89 = pneg %p83
      %p90 = scmp.eq.s32.totalorder %s11, 7
      %p91 = por %p89, %p90
      %p92 = scmp.ne.s32.totalorder %s84, %s87
      %p93 = scmp.eq.s32.totalorder %s11, 0
      %p94 = por %p92, %p93
      %p95 = scmp.ne.s32.totalorder %s84, %s87
      %p96 = scmp.eq.s32.totalorder %s16, 7
      %p97 = por %p95, %p96
      %p98 = scmp.ne.s32.totalorder %s87, %s88
      %p99 = scmp.eq.s32.totalorder %s16, 0
      %p100 = por %p98, %p99
      %p101 = scmp.ne.s32.totalorder %s87, %s88
      %p102 = scmp.eq.s32.totalorder %s17, 7
      %p103 = por %p101, %p102
      %p105 = scmp.ne.s32.totalorder %s88, %s104
      %p106 = scmp.eq.s32.totalorder %s17, 0
      %p107 = por %p105, %p106
      %p108 = scmp.le.s32.totalorder 1, %s11
      %p109 = scmp.lt.s32.totalorder %s11, 9
      %p110 = pnand %p108, %p109
      %p111 = pneg %p110
      // Predicated region
      $region9: #{tpu_custom_call.1} parent=5 // pred_check
        _
      $region10: #{tpu_custom_call.1} parent=5 // pred_check_branch
        %113 = sbr.rel (%p110) target = $region12
      $region11: #{tpu_custom_call.1} parent=5 // pred_region
        %s114 = ssub.s32 %s11, 1
        // Predicated region
        $region13: #{tpu_custom_call.1} parent=11 // pred_check
          %p115 = pneg %p72
        $region14: #{tpu_custom_call.1} parent=11 // pred_check_branch
          %117 = sbr.rel (%p115) target = $region16
        $region15: #{tpu_custom_call.1} parent=11 // pred_region
          _
        $region16: #{tpu_custom_call.1} parent=11 // pred_fallthru
          _
      $region12: #{tpu_custom_call.1} parent=5 // pred_fallthru
        _
      %p118 = scmp.lt.s32.totalorder %s11, 8
      // Predicated region
      $region17: #{tpu_custom_call.1} parent=5 // pred_check
        %p119 = pneg %p118
      $region18: #{tpu_custom_call.1} parent=5 // pred_check_branch
        %121 = sbr.rel (%p119) target = $region20
      $region19: #{tpu_custom_call.1} parent=5 // pred_region
        // Predicated region
        $region21: #{tpu_custom_call.1} parent=19 // pred_check
          %p122 = pneg %p45
        $region22: #{tpu_custom_call.1} parent=19 // pred_check_branch
          %124 = sbr.rel (%p122) target = $region24
        $region23: #{tpu_custom_call.1} parent=19 // pred_region
          %s125 = sand.u32 %s35, 1
          %s126 = scalar_lea.sflag [#allocation3], %s125
          %s127 = sand.u32 %s35, 1
          %s128 = smul.addr %s127, 128
          %s129 = scalar_lea.vmem [#allocation2], %s128
          %s130 = smul.u32 16, %s19
          %s132 = ssub.s32 2048, 2048
          %133 = vsyncadd %s126, %s132
          %s134 = smul.addr %s130, 2
          %s135 = smul.addr %s18, 64
          %s136 = sadd.s32 %s134, %s135
          %s137 = smul.addr %s136, 64
          %s138 = scalar_lea.hbm %s0, %s137
          %s139 = sshll.u32 %s129, 4
          %s140 = int_to_ptr.vmem [resolvable:$true] %s139
          %145 = dma.hbm_to_vmem [thread:$0]  %s138, 2048, %s140, %s126, 128, 128, 8
        $region24: #{tpu_custom_call.1} parent=19 // pred_fallthru
          _
      $region20: #{tpu_custom_call.1} parent=5 // pred_fallthru
        _
      %p146 = scmp.le.s32.totalorder 1, %s11
      %p147 = scmp.lt.s32.totalorder %s11, 9
      %p148 = pnand %p146, %p147
      %p149 = pneg %p148
      // Predicated region
      $region25: #{tpu_custom_call.1} parent=5 // pred_check
        _
      $region26: #{tpu_custom_call.1} parent=5 // pred_check_branch
        %151 = sbr.rel (%p148) target = $region28
      $region27: #{tpu_custom_call.1} parent=5 // pred_region
        %s152 = ssub.s32 %s11, 1
        %s153 = sand.u32 %s38, 1
        %s154 = scalar_lea.sflag [#allocation3], %s153
        %s155 = sand.u32 %s38, 1
        %s156 = smul.addr %s155, 128
        %s157 = scalar_lea.vmem [#allocation2], %s156
        // Predicated region
        $region29: #{tpu_custom_call.1} parent=27 // pred_check
          %p158 = pneg %p51
        $region30: #{tpu_custom_call.1} parent=27 // pred_check_branch
          %160 = sbr.rel (%p158) target = $region32
        $region31: #{tpu_custom_call.1} parent=27 // pred_region
          %161 = dma.done %s154, 2048
        $region32: #{tpu_custom_call.1} parent=27 // pred_fallthru
          _
        %s162 = sand.u32 %s38, 1
        %s163 = scalar_lea.sflag [#allocation3], %s162
        %s164 = sand.u32 %s38, 1
        %s165 = smul.addr %s164, 128
        %s166 = scalar_lea.vmem [#allocation2], %s165
        %p167 = pneg %p51
        %p168 = pneg %p48
        %p169 = pneg %p72
        %p170 = pneg %p69
        %p171 = pneg %p100
        %p172 = pneg %p97
        %s173 = smul.u32 16, %s21
        %p174 = scmp.lt.s32.totalorder %s20, 3
        %s175 = scalar_select %p174, %s20, 3
        %p176 = scmp.lt.s32.totalorder %s173, 31
        %s177 = scalar_select %p176, %s173, 31
        %s178 = smul.addr %s175, 32
        %s179 = sadd.s32 %s177, %s178
        %s180 = smul.addr %s179, 8
        %s181 = scalar_lea.vmem %s2, %s180
        %s182 = smul.u32 16, %s21
        %s183 = smul.u32 16, %s21
        %p184 = scmp.lt.s32.totalorder %s20, 3
        %s185 = scalar_select %p184, %s20, 3
        %p186 = scmp.lt.s32.totalorder %s183, 31
        %s187 = scalar_select %p186, %s183, 31
        %s188 = smul.addr %s185, 32
        %s189 = sadd.s32 %s187, %s188
        %s190 = smul.addr %s189, 8
        %s191 = scalar_lea.vmem %s2, %s190
        %s192 = smul.u32 16, %s21
        %v194 = vld [vmem:[%s157] sm:$0xff]
        %v195 = vld [vmem:[%s157 + $0x8] sm:$0xff]
        %v196 = vld [vmem:[%s157 + $0x10] sm:$0xff]
        %v197 = vld [vmem:[%s157 + $0x18] sm:$0xff]
        %v198 = vld [vmem:[%s157 + $0x20] sm:$0xff]
        %v199 = vld [vmem:[%s157 + $0x28] sm:$0xff]
        %v200 = vld [vmem:[%s157 + $0x30] sm:$0xff]
        %v201 = vld [vmem:[%s157 + $0x38] sm:$0xff]
        %v202 = vld [vmem:[%s157 + $0x40] sm:$0xff]
        %v203 = vld [vmem:[%s157 + $0x48] sm:$0xff]
        %v204 = vld [vmem:[%s157 + $0x50] sm:$0xff]
        %v205 = vld [vmem:[%s157 + $0x58] sm:$0xff]
        %v206 = vld [vmem:[%s157 + $0x60] sm:$0xff]
        %v207 = vld [vmem:[%s157 + $0x68] sm:$0xff]
        %v208 = vld [vmem:[%s157 + $0x70] sm:$0xff]
        %v209 = vld [vmem:[%s157 + $0x78] sm:$0xff]
        %v210 = vld [vmem:[%s1] sm:$0xf]
        %v211 = vld [vmem:[%s1 + $0x4] sm:$0xf]
        %v212 = vld [vmem:[%s1 + $0x8] sm:$0xf]
        %v213 = vld [vmem:[%s1 + $0xc] sm:$0xf]
        %v214 = vld [vmem:[%s1 + $0x10] sm:$0xf]
        %v215 = vld [vmem:[%s1 + $0x14] sm:$0xf]
        %v216 = vld [vmem:[%s1 + $0x18] sm:$0xf]
        %v217 = vld [vmem:[%s1 + $0x1c] sm:$0xf]
        %v218 = vld [vmem:[%s1 + $0x20] sm:$0xf]
        %v219 = vld [vmem:[%s1 + $0x24] sm:$0xf]
        %v220 = vld [vmem:[%s1 + $0x28] sm:$0xf]
        %v221 = vld [vmem:[%s1 + $0x2c] sm:$0xf]
        %v222 = vld [vmem:[%s1 + $0x30] sm:$0xf]
        %v223 = vld [vmem:[%s1 + $0x34] sm:$0xf]
        %v224 = vld [vmem:[%s1 + $0x38] sm:$0xf]
        %v225 = vld [vmem:[%s1 + $0x3c] sm:$0xf]
        %v226 = vld [vmem:[%s1 + $0x40] sm:$0xf]
        %v227 = vld [vmem:[%s1 + $0x44] sm:$0xf]
        %v228 = vld [vmem:[%s1 + $0x48] sm:$0xf]
        %v229 = vld [vmem:[%s1 + $0x4c] sm:$0xf]
        %v230 = vld [vmem:[%s1 + $0x50] sm:$0xf]
        %v231 = vld [vmem:[%s1 + $0x54] sm:$0xf]
        %v232 = vld [vmem:[%s1 + $0x58] sm:$0xf]
        %v233 = vld [vmem:[%s1 + $0x5c] sm:$0xf]
        %v234 = vld [vmem:[%s1 + $0x60] sm:$0xf]
        %v235 = vld [vmem:[%s1 + $0x64] sm:$0xf]
        %v236 = vld [vmem:[%s1 + $0x68] sm:$0xf]
        %v237 = vld [vmem:[%s1 + $0x6c] sm:$0xf]
        %v238 = vld [vmem:[%s1 + $0x70] sm:$0xf]
        %v239 = vld [vmem:[%s1 + $0x74] sm:$0xf]
        %v240 = vld [vmem:[%s1 + $0x78] sm:$0xf]
        %v241 = vld [vmem:[%s1 + $0x7c] sm:$0xf]
        %v258 = vunpack.c.l.b16 %v194
        %v259 = vunpack.c.h.b16 %v194
        %v260 = vunpack.c.l.b16 %v195
        %v261 = vunpack.c.h.b16 %v195
        %v262 = vunpack.c.l.b16 %v196
        %v263 = vunpack.c.h.b16 %v196
        %v264 = vunpack.c.l.b16 %v197
        %v265 = vunpack.c.h.b16 %v197
        %v266 = vunpack.c.l.b16 %v198
        %v267 = vunpack.c.h.b16 %v198
        %v268 = vunpack.c.l.b16 %v199
        %v269 = vunpack.c.h.b16 %v199
        %v270 = vunpack.c.l.b16 %v200
        %v271 = vunpack.c.h.b16 %v200
        %v272 = vunpack.c.l.b16 %v201
        %v273 = vunpack.c.h.b16 %v201
        %v274 = vunpack.c.l.b16 %v202
        %v275 = vunpack.c.h.b16 %v202
        %v276 = vunpack.c.l.b16 %v203
        %v277 = vunpack.c.h.b16 %v203
        %v278 = vunpack.c.l.b16 %v204
        %v279 = vunpack.c.h.b16 %v204
        %v280 = vunpack.c.l.b16 %v205
        %v281 = vunpack.c.h.b16 %v205
        %v282 = vunpack.c.l.b16 %v206
        %v283 = vunpack.c.h.b16 %v206
        %v284 = vunpack.c.l.b16 %v207
        %v285 = vunpack.c.h.b16 %v207
        %v286 = vunpack.c.l.b16 %v208
        %v287 = vunpack.c.h.b16 %v208
        %v288 = vunpack.c.l.b16 %v209
        %v289 = vunpack.c.h.b16 %v209
        %v290 = vpack.c.b16 %v260, %v258
        %v291 = vpack.c.b16 %v261, %v259
        %v292 = vpack.c.b16 %v264, %v262
        %v293 = vpack.c.b16 %v265, %v263
        %v294 = vpack.c.b16 %v268, %v266
        %v295 = vpack.c.b16 %v269, %v267
        %v296 = vpack.c.b16 %v272, %v270
        %v297 = vpack.c.b16 %v273, %v271
        %v298 = vpack.c.b16 %v276, %v274
        %v299 = vpack.c.b16 %v277, %v275
        %v300 = vpack.c.b16 %v280, %v278
        %v301 = vpack.c.b16 %v281, %v279
        %v302 = vpack.c.b16 %v284, %v282
        %v303 = vpack.c.b16 %v285, %v283
        %v304 = vpack.c.b16 %v288, %v286
        %v305 = vpack.c.b16 %v289, %v287
        %v354 = vunpack.c.l.b16 %v210
        %v355 = vunpack.c.l.b16 %v211
        %v356 = vunpack.c.l.b16 %v212
        %v357 = vunpack.c.l.b16 %v213
        %v358 = vunpack.c.l.b16 %v214
        %v359 = vunpack.c.l.b16 %v215
        %v360 = vunpack.c.l.b16 %v216
        %v361 = vunpack.c.l.b16 %v217
        %v362 = vunpack.c.l.b16 %v218
        %v363 = vunpack.c.l.b16 %v219
        %v364 = vunpack.c.l.b16 %v220
        %v365 = vunpack.c.l.b16 %v221
        %v366 = vunpack.c.l.b16 %v222
        %v367 = vunpack.c.l.b16 %v223
        %v368 = vunpack.c.l.b16 %v224
        %v369 = vunpack.c.l.b16 %v225
        %v370 = vunpack.c.l.b16 %v226
        %v371 = vunpack.c.l.b16 %v227
        %v372 = vunpack.c.l.b16 %v228
        %v373 = vunpack.c.l.b16 %v229
        %v374 = vunpack.c.l.b16 %v230
        %v375 = vunpack.c.l.b16 %v231
        %v376 = vunpack.c.l.b16 %v232
        %v377 = vunpack.c.l.b16 %v233
        %v378 = vunpack.c.l.b16 %v234
        %v379 = vunpack.c.l.b16 %v235
        %v380 = vunpack.c.l.b16 %v236
        %v381 = vunpack.c.l.b16 %v237
        %v382 = vunpack.c.l.b16 %v238
        %v383 = vunpack.c.l.b16 %v239
        %v384 = vunpack.c.l.b16 %v240
        %v385 = vunpack.c.l.b16 %v241
        %v386 = vpack.c.b16 %v355, %v354
        %v387 = vpack.c.b16 %v357, %v356
        %v388 = vpack.c.b16 %v359, %v358
        %v389 = vpack.c.b16 %v361, %v360
        %v390 = vpack.c.b16 %v363, %v362
        %v391 = vpack.c.b16 %v365, %v364
        %v392 = vpack.c.b16 %v367, %v366
        %v393 = vpack.c.b16 %v369, %v368
        %v394 = vpack.c.b16 %v371, %v370
        %v395 = vpack.c.b16 %v373, %v372
        %v396 = vpack.c.b16 %v375, %v374
        %v397 = vpack.c.b16 %v377, %v376
        %v398 = vpack.c.b16 %v379, %v378
        %v399 = vpack.c.b16 %v381, %v380
        %v400 = vpack.c.b16 %v383, %v382
        %v401 = vpack.c.b16 %v385, %v384
        %418 = vmatprep.subr.bf16.mxu0 0
        %419 = vmatpush1.bf16.msra.mxu0 %v393
        %420 = vmatprep.subr.bf16.mxu0 0
        %421 = vmatpush1.bf16.msra.mxu0 %v392
        %422 = vmatprep.subr.bf16.mxu0 0
        %423 = vmatpush1.bf16.msra.mxu0 %v391
        %424 = vmatprep.subr.bf16.mxu0 0
        %425 = vmatpush1.bf16.msra.mxu0 %v390
        %426 = vmatprep.subr.bf16.mxu0 0
        %427 = vmatpush1.bf16.msra.mxu0 %v389
        %428 = vmatprep.subr.bf16.mxu0 0
        %429 = vmatpush1.bf16.msra.mxu0 %v388
        %430 = vmatprep.subr.bf16.mxu0 0
        %431 = vmatpush1.bf16.msra.mxu0 %v387
        %432 = vmatprep.subr.bf16.mxu0 0
        %433 = vmatpush1.bf16.msra.mxu0 %v386
        %434 = vmatprep.subr.bf16.mxu0 0
        %435 = vmatpush2.bf16.msra.mxu0 %v401
        %436 = vmatprep.subr.bf16.mxu0 0
        %437 = vmatpush2.bf16.msra.mxu0 %v400
        %438 = vmatprep.subr.bf16.mxu0 0
        %439 = vmatpush2.bf16.msra.mxu0 %v399
        %440 = vmatprep.subr.bf16.mxu0 0
        %441 = vmatpush2.bf16.msra.mxu0 %v398
        %442 = vmatprep.subr.bf16.mxu0 0
        %443 = vmatpush2.bf16.msra.mxu0 %v397
        %444 = vmatprep.subr.bf16.mxu0 0
        %445 = vmatpush2.bf16.msra.mxu0 %v396
        %446 = vmatprep.subr.bf16.mxu0 0
        %447 = vmatpush2.bf16.msra.mxu0 %v395
        %448 = vmatprep.subr.bf16.mxu0 0
        %449 = vmatpush2.bf16.msra.mxu0 %v394
        %450 = vmatprep.mubr.bf16.mxu0 %v291
        %451 = vmatmul.mubr.bf16.gmra.mxu0 %v290
        %v452 = vpop.f32.mrf.mxu0
        %v453 = vadd.f32 0.0, %v452
        %v454 = vpop.f32.mrf.mxu0
        %v455 = vpop.f32.mrf.mxu0
        %v456 = vadd.f32 0.0, %v455
        %v457 = vpop.f32.mrf.mxu0
        %458 = vmatprep.mubr.bf16.mxu0 %v293
        %459 = vmatmul.mubr.bf16.gmra.mxu0 %v292
        %v460 = vpop.f32.mrf.mxu0
        %v461 = vadd.f32 0.0, %v460
        %v462 = vpop.f32.mrf.mxu0
        %v463 = vpop.f32.mrf.mxu0
        %v464 = vadd.f32 0.0, %v463
        %v465 = vpop.f32.mrf.mxu0
        %466 = vmatprep.mubr.bf16.mxu0 %v295
        %467 = vmatmul.mubr.bf16.gmra.mxu0 %v294
        %v468 = vpop.f32.mrf.mxu0
        %v469 = vadd.f32 0.0, %v468
        %v470 = vpop.f32.mrf.mxu0
        %v471 = vpop.f32.mrf.mxu0
        %v472 = vadd.f32 0.0, %v471
        %v473 = vpop.f32.mrf.mxu0
        %474 = vmatprep.mubr.bf16.mxu0 %v297
        %475 = vmatmul.mubr.bf16.gmra.mxu0 %v296
        %v476 = vpop.f32.mrf.mxu0
        %v477 = vadd.f32 0.0, %v476
        %v478 = vpop.f32.mrf.mxu0
        %v479 = vpop.f32.mrf.mxu0
        %v480 = vadd.f32 0.0, %v479
        %v481 = vpop.f32.mrf.mxu0
        %482 = vmatprep.mubr.bf16.mxu0 %v299
        %483 = vmatmul.mubr.bf16.gmra.mxu0 %v298
        %v484 = vpop.f32.mrf.mxu0
        %v485 = vadd.f32 0.0, %v484
        %v486 = vpop.f32.mrf.mxu0
        %v487 = vpop.f32.mrf.mxu0
        %v488 = vadd.f32 0.0, %v487
        %v489 = vpop.f32.mrf.mxu0
        %490 = vmatprep.mubr.bf16.mxu0 %v301
        %491 = vmatmul.mubr.bf16.gmra.mxu0 %v300
        %v492 = vpop.f32.mrf.mxu0
        %v493 = vadd.f32 0.0, %v492
        %v494 = vpop.f32.mrf.mxu0
        %v495 = vpop.f32.mrf.mxu0
        %v496 = vadd.f32 0.0, %v495
        %v497 = vpop.f32.mrf.mxu0
        %498 = vmatprep.mubr.bf16.mxu0 %v303
        %499 = vmatmul.mubr.bf16.gmra.mxu0 %v302
        %v500 = vpop.f32.mrf.mxu0
        %v501 = vadd.f32 0.0, %v500
        %v502 = vpop.f32.mrf.mxu0
        %v503 = vpop.f32.mrf.mxu0
        %v504 = vadd.f32 0.0, %v503
        %v505 = vpop.f32.mrf.mxu0
        %506 = vmatprep.mubr.bf16.mxu0 %v305
        %507 = vmatmul.mubr.bf16.gmra.mxu0 %v304
        %v508 = vpop.f32.mrf.mxu0
        %v509 = vadd.f32 0.0, %v508
        %v510 = vpop.f32.mrf.mxu0
        %v511 = vpop.f32.mrf.mxu0
        %v512 = vadd.f32 0.0, %v511
        %v513 = vpop.f32.mrf.mxu0
        %514 = vdwg.mxu0
        %vm515 = vcmask 7168
        %516 = vst.msk [vmem:[%s191] sm:$0xff] %vm515, %v453
        %517 = vst.msk [vmem:[%s191 + $0x8] sm:$0xff] %vm515, %v456
        %518 = vst.msk [vmem:[%s191 + $0x10] sm:$0xff] %vm515, %v461
        %519 = vst.msk [vmem:[%s191 + $0x18] sm:$0xff] %vm515, %v464
        %520 = vst.msk [vmem:[%s191 + $0x20] sm:$0xff] %vm515, %v469
        %521 = vst.msk [vmem:[%s191 + $0x28] sm:$0xff] %vm515, %v472
        %522 = vst.msk [vmem:[%s191 + $0x30] sm:$0xff] %vm515, %v477
        %523 = vst.msk [vmem:[%s191 + $0x38] sm:$0xff] %vm515, %v480
        %524 = vst.msk [vmem:[%s191 + $0x40] sm:$0xff] %vm515, %v485
        %525 = vst.msk [vmem:[%s191 + $0x48] sm:$0xff] %vm515, %v488
        %526 = vst.msk [vmem:[%s191 + $0x50] sm:$0xff] %vm515, %v493
        %527 = vst.msk [vmem:[%s191 + $0x58] sm:$0xff] %vm515, %v496
        %528 = vst.msk [vmem:[%s191 + $0x60] sm:$0xff] %vm515, %v501
        %529 = vst.msk [vmem:[%s191 + $0x68] sm:$0xff] %vm515, %v504
        %530 = vst.msk [vmem:[%s191 + $0x70] sm:$0xff] %vm515, %v509
        %531 = vst.msk [vmem:[%s191 + $0x78] sm:$0xff] %vm515, %v512
        %s532 = smul.u32 16, %s21
        %p533 = scmp.lt.s32.totalorder %s20, 3
        %s534 = scalar_select %p533, %s20, 3
        %p535 = scmp.lt.s32.totalorder %s532, 31
        %s536 = scalar_select %p535, %s532, 31
        %s537 = smul.addr %s534, 32
        %s538 = sadd.s32 %s536, %s537
        %s539 = smul.addr %s538, 8
        %s540 = scalar_lea.vmem %s2, %s539
        // Predicated region
        $region33: #{tpu_custom_call.1} parent=27 // pred_check
          %p541 = pneg %p97
        $region34: #{tpu_custom_call.1} parent=27 // pred_check_branch
          %543 = sbr.rel (%p541) target = $region36
        $region35: #{tpu_custom_call.1} parent=27 // pred_region
          %s544 = smul.u32 16, %s21
        $region36: #{tpu_custom_call.1} parent=27 // pred_fallthru
          _
      $region28: #{tpu_custom_call.1} parent=5 // pred_fallthru
        _
      %p545 = scmp.le.s32.totalorder 2, %s11
      // Predicated region
      $region37: #{tpu_custom_call.1} parent=5 // pred_check
        %p546 = pneg %p545
      $region38: #{tpu_custom_call.1} parent=5 // pred_check_branch
        %548 = sbr.rel (%p546) target = $region40
      $region39: #{tpu_custom_call.1} parent=5 // pred_region
        %s549 = ssub.s32 %s11, 2
        // Predicated region
        $region41: #{tpu_custom_call.1} parent=39 // pred_check
          %p550 = pneg %p103
        $region42: #{tpu_custom_call.1} parent=39 // pred_check_branch
          %552 = sbr.rel (%p550) target = $region44
        $region43: #{tpu_custom_call.1} parent=39 // pred_region
          %s553 = smul.u32 16, %s23
          %p554 = scmp.lt.s32.totalorder %s22, 3
          %s555 = scalar_select %p554, %s22, 3
          %p556 = scmp.lt.s32.totalorder %s553, 31
          %s557 = scalar_select %p556, %s553, 31
          %s558 = smul.addr %s555, 32
          %s559 = sadd.s32 %s557, %s558
          %s560 = smul.addr %s559, 8
          %s561 = scalar_lea.vmem %s2, %s560
        $region44: #{tpu_custom_call.1} parent=39 // pred_fallthru
          _
      $region40: #{tpu_custom_call.1} parent=5 // pred_fallthru
        _
    $region6: #{tpu_custom_call.1} parent=1 // loop_footer
      %s15 = sadd.s32 1, %s11
    $region7: #{tpu_custom_call.1} parent=1 // loop_footer_branch
      %10 = sbr.rel target = $region3
    $region8: #{tpu_custom_call.1} parent=1 // loop_exit
      _
    %562 = vsyncpa [#allocation3], 1
    %s563 = scalar_lea.sflag [#allocation3], 1
    %564 = vsyncpa %s563, 1

</llo_original>
